<compile_context>
chip_gen: v7x
topology: tpu7x:2x2x1
jax: 0.10.0
libtpu: 0.0.40
codegen_flags: <defaults>
</compile_context>

<pallas_src>
import functools

import jax
import jax.numpy as jnp
from jax.experimental import pallas as pl
from jax.experimental.pallas import tpu as pltpu


# --------------------------------------------------------------------------
# Host-side (one-time) parameter preparation: fold conv1*conv2, build the
# lane-dense weight slabs, biases and the interior mask.
# --------------------------------------------------------------------------
def prepare_model(params, H, W):
    w1, b1, w2, b2, w3, b3 = params
    hi = jax.lax.Precision.HIGHEST

    # Exact fold of conv1 (3x3, 3->32) with conv2 (1x1, 32->32): the 1x1 conv is a
    # pointwise channel mix, so no padding subtleties — this fold is exact.
    w12 = jnp.einsum('yxic,cd->yxid', w1, w2, precision=hi)        # (3,3,3,32)
    b12 = jnp.einsum('c,cd->d', b1, w2, precision=hi) + b2         # (32,)

    # Stage-A weight slab (32, 9*8): wa[d, t*8+ci] = w12[ky,kx,ci,d], t = ky*3+kx.
    wa = jnp.zeros((32, 9, 8), jnp.float32)
    wa = wa.at[:, :, :3].set(jnp.transpose(w12.reshape(9, 3, 32), (2, 0, 1)))
    wa = wa.reshape(32, 72)
    ba = b12.reshape(32, 1).astype(jnp.float32)

    # Stage-B weight slab (8, 9*32): wb[co, t*32+ci] = w3[ky,kx,ci,co].
    wb = jnp.zeros((8, 9, 32), jnp.float32)
    wb = wb.at[:3].set(jnp.transpose(w3.reshape(9, 32, 3), (2, 0, 1)))
    wb = wb.reshape(8, 288)
    bb = jnp.zeros((8, 1), jnp.float32).at[:3, 0].set(b3)

    # Interior mask on the per-image zero-padded pixel layout (1 px border + lane tail
    # are zeroed).  Shape (1, Lblk), Lblk = per-image lane block padded to 128.
    Hp, Wp = H + 2, W + 2
    Limg = Hp * Wp
    Lblk = ((Limg + 127) // 128) * 128
    lane = jnp.arange(Lblk)
    py = lane // Wp
    px = lane % Wp
    interior = (lane < Limg) & (py >= 1) & (py <= H) & (px >= 1) & (px <= W)
    mask = interior.astype(jnp.float32).reshape(1, Lblk)

    return wa, ba, wb, bb, mask


# --------------------------------------------------------------------------
# Pallas kernel: one image per grid step, two fused-K matmuls.
# --------------------------------------------------------------------------
def _features_kernel(x_ref, wa_ref, ba_ref, wb_ref, bb_ref, mask_ref, o_ref, *, Wp):
    # x_ref   : (8, Lblk)  rows 0-2 = input channels on the zero-padded pixel layout
    # wa_ref  : (32, 72)   folded conv1*conv2 weight slab   (K = 9 taps * 8 rows)
    # ba_ref  : (32, 1)
    # wb_ref  : (8, 288)   conv3 weight slab                (K = 9 taps * 32 rows)
    # bb_ref  : (8, 1)
    # mask_ref: (1, Lblk)  interior mask (1 inside the original image, 0 on border/tail)
    # o_ref   : (8, Lblk)  rows 0-2 = output channels (border/tail lanes are junk,
    #                      discarded by the wrapper)
    Lblk = x_ref.shape[-1]
    EXT = Wp + 1                                   # max |tap lane offset| of a 3x3 stencil

    def tap_slab(v):
        # v: (R, Lblk) -> (9*R, Lblk) where rows [t*R + c] hold v[c, lane + off_t].
        # Built from static lane slices of a zero-extended buffer (plain jnp only):
        # no per-tap iota/compare/select.  Out-of-image reads only affect border/tail
        # lanes, which the zero-padded layout / interior mask / wrapper slice discard.
        R = v.shape[0]
        z = jnp.zeros((R, EXT), jnp.float32)
        vp = jnp.concatenate([z, v, z], axis=1)    # (R, Lblk + 2*EXT)
        pieces = []
        for ky in range(3):
            for kx in range(3):
                off = (ky - 1) * Wp + (kx - 1)
                pieces.append(vp[:, EXT + off: EXT + off + Lblk])
        return jnp.concatenate(pieces, axis=0)

    # Stage A: folded conv1*conv2 (3x3, 3->32) — ONE matmul, K = 72.
    y = jnp.dot(wa_ref[...], tap_slab(x_ref[...]),
                preferred_element_type=jnp.float32) + ba_ref[...]
    # Reproduce the exact zero padding of the intermediate activation (one multiply).
    y = y * mask_ref[...]
    # Stage B: conv3 (3x3, 32->3) — ONE matmul, K = 288.
    o_ref[...] = (jnp.dot(wb_ref[...], tap_slab(y),
                          preferred_element_type=jnp.float32) + bb_ref[...])


def fused_features(x_nchw, prep):
    """Runs the three-conv `features` stack with one Pallas call."""
    wa, ba, wb, bb, mask = prep
    N, C, H, W = x_nchw.shape
    assert C == 3
    Hp, Wp = H + 2, W + 2
    Limg = Hp * Wp
    Lblk = ((Limg + 127) // 128) * 128
    assert mask.shape == (1, Lblk), "prepare_model() was built for a different H/W"

    # Channels-on-sublane, zero-padded pixel layout; per-image lane blocks padded to 128.
    xp = jnp.pad(x_nchw.astype(jnp.float32), ((0, 0), (0, 0), (1, 1), (1, 1)))
    xp = jnp.transpose(xp, (1, 0, 2, 3)).reshape(3, N, Limg)
    xp = jnp.pad(xp, ((0, 5), (0, 0), (0, Lblk - Limg)))           # (8, N, Lblk)
    x_rows = xp.reshape(8, N * Lblk)

    # VMEM per step at (1,3,64,64): ~7 MB (tap slabs dominate) — well under the default
    # scoped limit on v5e/v6e/v7x.
    # TODO(synk): for much larger H*W, tile the lane axis per image (grid axis over
    # 128-aligned pixel chunks with a halo) and set vmem_limit_bytes explicitly.
    kernel = functools.partial(_features_kernel, Wp=Wp)
    out = pl.pallas_call(
        kernel,
        out_shape=jax.ShapeDtypeStruct((8, N * Lblk), jnp.float32),
        grid_spec=pltpu.PrefetchScalarGridSpec(
            num_scalar_prefetch=0,
            grid=(N,),
            in_specs=[
                pl.BlockSpec((8, Lblk), lambda n: (0, n)),
                pl.BlockSpec((32, 72), lambda n: (0, 0)),
                pl.BlockSpec((32, 1), lambda n: (0, 0)),
                pl.BlockSpec((8, 288), lambda n: (0, 0)),
                pl.BlockSpec((8, 1), lambda n: (0, 0)),
                pl.BlockSpec((1, Lblk), lambda n: (0, 0)),
            ],
            out_specs=pl.BlockSpec((8, Lblk), lambda n: (0, n)),
        ),
        compiler_params=pltpu.CompilerParams(
            dimension_semantics=("parallel",)),
    )(x_rows, wa, ba, wb, bb, mask)

    # Strip channel pad, lane tail, and the 1-px spatial border; back to NCHW.
    out = out[:3].reshape(3, N, Lblk)[:, :, :Limg].reshape(3, N, Hp, Wp)
    out = out[:, :, 1:H + 1, 1:W + 1]
    return jnp.transpose(out, (1, 0, 2, 3))


def model_forward(x_nchw, prep):
    v1 = fused_features(x_nchw, prep)                    # (N, 3, H, W)
    # torch.split(v1, [1,1,1], dim=1)
    splits = (v1[:, 0:1], v1[:, 1:2], v1[:, 2:3])
    # torch.cat(splits, dim=1) reconstructs v1 exactly -> return v1 directly.
    # TODO(synk): self.save_for_backward(...) is not a valid nn.Module method (raises in
    #             eager PyTorch) and has no forward-pass effect; intentionally skipped.
    # TODO(synk): self.split1 / self.split2 are never used in forward(); not implemented.
    return v1, splits


def init_params(key):
    k1, k2, k3, k4, k5, k6 = jax.random.split(key, 6)
    # weights in (kh, kw, Cin, Cout) layout (synthetic, deterministic init)
    w1 = 0.1 * jax.random.normal(k1, (3, 3, 3, 32), jnp.float32)
    b1 = 0.1 * jax.random.normal(k2, (32,), jnp.float32)
    w2 = 0.1 * jax.random.normal(k3, (32, 32), jnp.float32)        # (Cin, Cout)
    b2 = 0.1 * jax.random.normal(k4, (32,), jnp.float32)
    w3 = 0.1 * jax.random.normal(k5, (3, 3, 32, 3), jnp.float32)
    b3 = 0.1 * jax.random.normal(k6, (3,), jnp.float32)
    return (w1, b1, w2, b2, w3, b3)


def _reference_features(x_nchw, params):
    """Pure-JAX reference (three separate lax.conv calls) for correctness."""
    w1, b1, w2, b2, w3, b3 = params

    def conv(x, w, b, pad):
        y = jax.lax.conv_general_dilated(
            x, w, window_strides=(1, 1), padding=[(pad, pad), (pad, pad)],
            dimension_numbers=("NCHW", "HWIO", "NCHW"),
            precision=jax.lax.Precision.HIGHEST)
        return y + b.reshape(1, -1, 1, 1)

    y = conv(x_nchw, w1, b1, 1)
    y = conv(y, w2.reshape(1, 1, 32, 32), b2, 0)
    y = conv(y, w3, b3, 1)
    return y


if __name__ == "__main__":
    key = jax.random.PRNGKey(0)
    kx, kp = jax.random.split(key)
    params = init_params(kp)

    fwd = jax.jit(model_forward)

    # Small batched shape plus the module's own input shape (1, 3, 64, 64).
    for shape in [(2, 3, 16, 16), (1, 3, 64, 64)]:
        N, _, H, W = shape
        x = jax.random.normal(kx, shape, jnp.float32)
        prep = prepare_model(params, H, W)          # hoisted out of the per-call graph

        cat, splits = fwd(x, prep)
        cat = jax.block_until_ready(cat)
        splits = jax.block_until_ready(splits)

        ref = _reference_features(x, params)
        assert cat.shape == shape
        assert all(s.shape == (N, 1, H, W) for s in splits)
        # The conv1*conv2 fold and the boundary handling are exact; the tolerance only
        # covers possible reduced-precision (bf16-pass) MXU rounding of the in-kernel
        # f32 matmuls on real hardware (interpret mode gives ~1e-6).
        err = float(jnp.max(jnp.abs(cat - ref)))
        assert jnp.allclose(cat, ref, atol=5e-3, rtol=5e-3), err
        assert jnp.allclose(jnp.concatenate(splits, axis=1), cat)

    print("KERNEL_OK")
</pallas_src>

<mosaic_0001>
module attributes {stable_mosaic.version = 11 : i64} {
  func.func @_features_kernel(%arg0: i32, %arg1: memref<8x384xf32, #tpu.memory_space<vmem>>, %arg2: memref<32x72xf32, #tpu.memory_space<vmem>>, %arg3: memref<32x1xf32, #tpu.memory_space<vmem>>, %arg4: memref<8x288xf32, #tpu.memory_space<vmem>>, %arg5: memref<8x1xf32, #tpu.memory_space<vmem>>, %arg6: memref<1x384xf32, #tpu.memory_space<vmem>>, %arg7: memref<8x384xf32, #tpu.memory_space<vmem>>) attributes {dimension_semantics = [#tpu.dimension_semantics<parallel>], iteration_bounds = array<i64: 2>, scalar_prefetch = 0 : i64, scratch_operands = 0 : i64, tpu.core_type = #tpu.core_type<tc>, window_params = [{transform_indices = @transform_0, window_bounds = array<i64: 8, 384>}, {pipeline_mode = #tpu.pipeline_mode<synchronous>, transform_indices = @transform_1, window_bounds = array<i64: 32, 72>}, {pipeline_mode = #tpu.pipeline_mode<synchronous>, transform_indices = @transform_2, window_bounds = array<i64: 32, 1>}, {pipeline_mode = #tpu.pipeline_mode<synchronous>, transform_indices = @transform_3, window_bounds = array<i64: 8, 288>}, {pipeline_mode = #tpu.pipeline_mode<synchronous>, transform_indices = @transform_4, window_bounds = array<i64: 8, 1>}, {pipeline_mode = #tpu.pipeline_mode<synchronous>, transform_indices = @transform_5, window_bounds = array<i64: 1, 384>}, {transform_indices = @transform_6, window_bounds = array<i64: 8, 384>}]} {
    %c0 = arith.constant 0 : index
    %c0_0 = arith.constant 0 : index
    %0 = vector.load %arg2[%c0, %c0_0] : memref<32x72xf32, #tpu.memory_space<vmem>>, vector<32x72xf32>
    %c0_1 = arith.constant 0 : index
    %c0_2 = arith.constant 0 : index
    %1 = vector.load %arg1[%c0_1, %c0_2] : memref<8x384xf32, #tpu.memory_space<vmem>>, vector<8x384xf32>
    %cst = arith.constant 0.000000e+00 : f32
    %2 = vector.broadcast %cst : f32 to vector<8x19xf32>
    %3 = tpu.concatenate %2, %1, %2 in 1 : vector<8x19xf32>, vector<8x384xf32>, vector<8x19xf32> -> vector<8x422xf32>
    %4 = vector.extract_strided_slice %3 {offsets = [0, 0], sizes = [8, 384], strides = [1, 1]} : vector<8x422xf32> to vector<8x384xf32>
    %5 = vector.extract_strided_slice %3 {offsets = [0, 1], sizes = [8, 384], strides = [1, 1]} : vector<8x422xf32> to vector<8x384xf32>
    %6 = vector.extract_strided_slice %3 {offsets = [0, 2], sizes = [8, 384], strides = [1, 1]} : vector<8x422xf32> to vector<8x384xf32>
    %7 = vector.extract_strided_slice %3 {offsets = [0, 18], sizes = [8, 384], strides = [1, 1]} : vector<8x422xf32> to vector<8x384xf32>
    %8 = vector.extract_strided_slice %3 {offsets = [0, 19], sizes = [8, 384], strides = [1, 1]} : vector<8x422xf32> to vector<8x384xf32>
    %9 = vector.extract_strided_slice %3 {offsets = [0, 20], sizes = [8, 384], strides = [1, 1]} : vector<8x422xf32> to vector<8x384xf32>
    %10 = vector.extract_strided_slice %3 {offsets = [0, 36], sizes = [8, 384], strides = [1, 1]} : vector<8x422xf32> to vector<8x384xf32>
    %11 = vector.extract_strided_slice %3 {offsets = [0, 37], sizes = [8, 384], strides = [1, 1]} : vector<8x422xf32> to vector<8x384xf32>
    %12 = vector.extract_strided_slice %3 {offsets = [0, 38], sizes = [8, 384], strides = [1, 1]} : vector<8x422xf32> to vector<8x384xf32>
    %13 = tpu.concatenate %4, %5, %6, %7, %8, %9, %10, %11, %12 in 0 : vector<8x384xf32>, vector<8x384xf32>, vector<8x384xf32>, vector<8x384xf32>, vector<8x384xf32>, vector<8x384xf32>, vector<8x384xf32>, vector<8x384xf32>, vector<8x384xf32> -> vector<72x384xf32>
    %cst_3 = arith.constant dense<0.000000e+00> : vector<32x384xf32>
    %14 = tpu.matmul %0, %13, %cst_3 {dimension_numbers = #tpu.dot_dimension_numbers<[1], [0], [0], [1], [0, 0, 1, 1], [], []>} : vector<32x72xf32>, vector<72x384xf32>, vector<32x384xf32> -> vector<32x384xf32>
    %c0_4 = arith.constant 0 : index
    %c0_5 = arith.constant 0 : index
    %15 = vector.load %arg3[%c0_4, %c0_5] : memref<32x1xf32, #tpu.memory_space<vmem>>, vector<32x1xf32>
    %16 = vector.broadcast %15 : vector<32x1xf32> to vector<32x384xf32>
    %17 = arith.addf %14, %16 : vector<32x384xf32>
    %c0_6 = arith.constant 0 : index
    %c0_7 = arith.constant 0 : index
    %18 = vector.load %arg6[%c0_6, %c0_7] : memref<1x384xf32, #tpu.memory_space<vmem>>, vector<1x384xf32>
    %19 = vector.broadcast %18 : vector<1x384xf32> to vector<32x384xf32>
    %20 = arith.mulf %17, %19 : vector<32x384xf32>
    %c0_8 = arith.constant 0 : index
    %c0_9 = arith.constant 0 : index
    %21 = vector.load %arg4[%c0_8, %c0_9] : memref<8x288xf32, #tpu.memory_space<vmem>>, vector<8x288xf32>
    %cst_10 = arith.constant 0.000000e+00 : f32
    %22 = vector.broadcast %cst_10 : f32 to vector<32x19xf32>
    %23 = tpu.concatenate %22, %20, %22 in 1 : vector<32x19xf32>, vector<32x384xf32>, vector<32x19xf32> -> vector<32x422xf32>
    %24 = vector.extract_strided_slice %23 {offsets = [0, 0], sizes = [32, 384], strides = [1, 1]} : vector<32x422xf32> to vector<32x384xf32>
    %25 = vector.extract_strided_slice %23 {offsets = [0, 1], sizes = [32, 384], strides = [1, 1]} : vector<32x422xf32> to vector<32x384xf32>
    %26 = vector.extract_strided_slice %23 {offsets = [0, 2], sizes = [32, 384], strides = [1, 1]} : vector<32x422xf32> to vector<32x384xf32>
    %27 = vector.extract_strided_slice %23 {offsets = [0, 18], sizes = [32, 384], strides = [1, 1]} : vector<32x422xf32> to vector<32x384xf32>
    %28 = vector.extract_strided_slice %23 {offsets = [0, 19], sizes = [32, 384], strides = [1, 1]} : vector<32x422xf32> to vector<32x384xf32>
    %29 = vector.extract_strided_slice %23 {offsets = [0, 20], sizes = [32, 384], strides = [1, 1]} : vector<32x422xf32> to vector<32x384xf32>
    %30 = vector.extract_strided_slice %23 {offsets = [0, 36], sizes = [32, 384], strides = [1, 1]} : vector<32x422xf32> to vector<32x384xf32>
    %31 = vector.extract_strided_slice %23 {offsets = [0, 37], sizes = [32, 384], strides = [1, 1]} : vector<32x422xf32> to vector<32x384xf32>
    %32 = vector.extract_strided_slice %23 {offsets = [0, 38], sizes = [32, 384], strides = [1, 1]} : vector<32x422xf32> to vector<32x384xf32>
    %33 = tpu.concatenate %24, %25, %26, %27, %28, %29, %30, %31, %32 in 0 : vector<32x384xf32>, vector<32x384xf32>, vector<32x384xf32>, vector<32x384xf32>, vector<32x384xf32>, vector<32x384xf32>, vector<32x384xf32>, vector<32x384xf32>, vector<32x384xf32> -> vector<288x384xf32>
    %cst_11 = arith.constant dense<0.000000e+00> : vector<8x384xf32>
    %34 = tpu.matmul %21, %33, %cst_11 {dimension_numbers = #tpu.dot_dimension_numbers<[1], [0], [0], [1], [0, 0, 1, 1], [], []>} : vector<8x288xf32>, vector<288x384xf32>, vector<8x384xf32> -> vector<8x384xf32>
    %c0_12 = arith.constant 0 : index
    %c0_13 = arith.constant 0 : index
    %35 = vector.load %arg5[%c0_12, %c0_13] : memref<8x1xf32, #tpu.memory_space<vmem>>, vector<8x1xf32>
    %36 = vector.broadcast %35 : vector<8x1xf32> to vector<8x384xf32>
    %37 = arith.addf %34, %36 : vector<8x384xf32>
    %c0_14 = arith.constant 0 : index
    %c0_15 = arith.constant 0 : index
    %38 = vector.load %arg7[%c0_14, %c0_15] : memref<8x384xf32, #tpu.memory_space<vmem>>, vector<8x384xf32>
    tpu.vector_store %arg7[%c0_14, %c0_15], %37 {strides = array<i32>} : memref<8x384xf32, #tpu.memory_space<vmem>>, vector<8x384xf32>,
    return
  }
  func.func @transform_0(%arg0: i32) -> (i32, i32) {
    %c0_i32 = arith.constant 0 : i32
    %c0_i32_0 = arith.constant 0 : i32
    return %c0_i32, %arg0 : i32, i32
  }
  func.func @transform_1(%arg0: i32) -> (i32, i32) {
    %c0_i32 = arith.constant 0 : i32
    %c0_i32_0 = arith.constant 0 : i32
    %c0_i32_1 = arith.constant 0 : i32
    return %c0_i32, %c0_i32_0 : i32, i32
  }
  func.func @transform_2(%arg0: i32) -> (i32, i32) {
    %c0_i32 = arith.constant 0 : i32
    %c0_i32_0 = arith.constant 0 : i32
    %c0_i32_1 = arith.constant 0 : i32
    return %c0_i32, %c0_i32_0 : i32, i32
  }
  func.func @transform_3(%arg0: i32) -> (i32, i32) {
    %c0_i32 = arith.constant 0 : i32
    %c0_i32_0 = arith.constant 0 : i32
    %c0_i32_1 = arith.constant 0 : i32
    return %c0_i32, %c0_i32_0 : i32, i32
  }
  func.func @transform_4(%arg0: i32) -> (i32, i32) {
    %c0_i32 = arith.constant 0 : i32
    %c0_i32_0 = arith.constant 0 : i32
    %c0_i32_1 = arith.constant 0 : i32
    return %c0_i32, %c0_i32_0 : i32, i32
  }
  func.func @transform_5(%arg0: i32) -> (i32, i32) {
    %c0_i32 = arith.constant 0 : i32
    %c0_i32_0 = arith.constant 0 : i32
    %c0_i32_1 = arith.constant 0 : i32
    return %c0_i32, %c0_i32_0 : i32, i32
  }
  func.func @transform_6(%arg0: i32) -> (i32, i32) {
    %c0_i32 = arith.constant 0 : i32
    %c0_i32_0 = arith.constant 0 : i32
    return %c0_i32, %arg0 : i32, i32
  }
}

</mosaic_0001>

<llo_original>
// kernel: model_forward.1
$region0: #{model_forward.1}
  #allocation0 [shape = 'u32[]', space=smem, size = 0x4, offset = 0x4, fixed_abs, tag = 'smem constant byte address 0x4 - core index']
  #allocation1 [shape = 'u32[144,128]{1,0:T(1,128)}', space=vmem, size = 0x12000, scoped, tag = 'internal scratch']
  %s0 = inlined_call_operand.vmem [shape: f32[8,768], index: 0, kind: input, shape index: {}]
  %s1 = inlined_call_operand.vmem [shape: f32[32,72], index: 1, kind: input, shape index: {}]
  %s2 = inlined_call_operand.vmem [shape: f32[32,1], index: 2, kind: input, shape index: {}]
  %s3 = inlined_call_operand.vmem [shape: f32[8,288], index: 3, kind: input, shape index: {}]
  %s4 = inlined_call_operand.vmem [shape: f32[8,1], index: 4, kind: input, shape index: {}]
  %s5 = inlined_call_operand.vmem [shape: f32[1,384], index: 5, kind: input, shape index: {}]
  %s6 = inlined_call_operand.vmem [shape: f32[8,768], index: 6, kind: output, shape index: {}]
  %s7 = sld [smem:[#allocation0]]
  $region57: #{model_forward.1} parent=0
    _
  %s9 = ssub.s32 1, %s7
  %s10 = scalar_select 0, %s9, %s7
  loop: start=0, step=1, limit=4
  $region2: #{model_forward.1} parent=0 // loop_pre_header
    _
  $region3: #{model_forward.1} parent=0 // loop_header
    %s12 = sphi 0, %s16
    %p13 = scmp.ge.s32.totalorder %s12, 4
    %s22 = sphi 0, %s24
    %s25 = sphi 0, %s22
    %s26 = sphi 0, %s25
    %s42 = sphi 0, %s26
    %s46 = sphi 0, %s46
    %s48 = sphi 0, %s46
    %s49 = sphi 0, %s48
    %s63 = sphi 0, %s49
    %s67 = sphi 0, %s67
    %s69 = sphi 0, %s67
    %s70 = sphi 0, %s69
    %s84 = sphi 0, %s70
    %s88 = sphi 0, %s88
    %s90 = sphi 0, %s88
    %s91 = sphi 0, %s90
    %s105 = sphi 0, %s91
    %s109 = sphi 0, %s109
    %s111 = sphi 0, %s109
    %s112 = sphi 0, %s111
    %s126 = sphi 0, %s112
    %s130 = sphi 0, %s130
    %s132 = sphi 0, %s130
    %s133 = sphi 0, %s132
    %s147 = sphi 0, %s133
    %s153 = sphi 0, %s155
    %s156 = sphi 0, %s153
    %s157 = sphi 0, %s156
    %s173 = sphi 0, %s157
  $region4: #{model_forward.1} parent=0 // loop_header_branch
    %15 = sbr.rel (%p13) target = $region8
  $region5: #{model_forward.1} parent=0 // loop_body
    %s17 = ssub.s32 %s12, 1
    %s18 = ssub.s32 %s12, 2
    %s19 = sadd.s32 %s12, 1
    %s20 = ssub.s32 %s12, %s19
    %p21 = scmp.eq.s32.totalorder %s20, 0
    %s23 = sadd.s32 %s22, 1
    %s24 = scalar_select %p21, %s22, %s23
    %p27 = pneg %p21
    %p28 = scmp.eq.s32.totalorder %s12, 1
    %p29 = por %p27, %p28
    %p30 = scmp.ne.s32.totalorder %s22, %s25
    %p31 = scmp.eq.s32.totalorder %s12, 0
    %p32 = por %p30, %p31
    %p33 = scmp.ne.s32.totalorder %s22, %s25
    %p34 = scmp.eq.s32.totalorder %s17, 1
    %p35 = por %p33, %p34
    %p36 = scmp.ne.s32.totalorder %s25, %s26
    %p37 = scmp.eq.s32.totalorder %s17, 0
    %p38 = por %p36, %p37
    %p39 = scmp.ne.s32.totalorder %s25, %s26
    %p40 = scmp.eq.s32.totalorder %s18, 1
    %p41 = por %p39, %p40
    %p43 = scmp.ne.s32.totalorder %s26, %s42
    %p44 = scmp.eq.s32.totalorder %s18, 0
    %p45 = por %p43, %p44
    %s47 = sadd.s32 %s46, 1
    %p50 = scmp.eq.s32.totalorder %s12, 1
    %p51 = scmp.ne.s32.totalorder %s46, %s48
    %p52 = scmp.eq.s32.totalorder %s12, 0
    %p53 = por %p51, %p52
    %p54 = scmp.ne.s32.totalorder %s46, %s48
    %p55 = scmp.eq.s32.totalorder %s17, 1
    %p56 = por %p54, %p55
    %p57 = scmp.ne.s32.totalorder %s48, %s49
    %p58 = scmp.eq.s32.totalorder %s17, 0
    %p59 = por %p57, %p58
    %p60 = scmp.ne.s32.totalorder %s48, %s49
    %p61 = scmp.eq.s32.totalorder %s18, 1
    %p62 = por %p60, %p61
    %p64 = scmp.ne.s32.totalorder %s49, %s63
    %p65 = scmp.eq.s32.totalorder %s18, 0
    %p66 = por %p64, %p65
    %s68 = sadd.s32 %s67, 1
    %p71 = scmp.eq.s32.totalorder %s12, 1
    %p72 = scmp.ne.s32.totalorder %s67, %s69
    %p73 = scmp.eq.s32.totalorder %s12, 0
    %p74 = por %p72, %p73
    %p75 = scmp.ne.s32.totalorder %s67, %s69
    %p76 = scmp.eq.s32.totalorder %s17, 1
    %p77 = por %p75, %p76
    %p78 = scmp.ne.s32.totalorder %s69, %s70
    %p79 = scmp.eq.s32.totalorder %s17, 0
    %p80 = por %p78, %p79
    %p81 = scmp.ne.s32.totalorder %s69, %s70
    %p82 = scmp.eq.s32.totalorder %s18, 1
    %p83 = por %p81, %p82
    %p85 = scmp.ne.s32.totalorder %s70, %s84
    %p86 = scmp.eq.s32.totalorder %s18, 0
    %p87 = por %p85, %p86
    %s89 = sadd.s32 %s88, 1
    %p92 = scmp.eq.s32.totalorder %s12, 1
    %p93 = scmp.ne.s32.totalorder %s88, %s90
    %p94 = scmp.eq.s32.totalorder %s12, 0
    %p95 = por %p93, %p94
    %p96 = scmp.ne.s32.totalorder %s88, %s90
    %p97 = scmp.eq.s32.totalorder %s17, 1
    %p98 = por %p96, %p97
    %p99 = scmp.ne.s32.totalorder %s90, %s91
    %p100 = scmp.eq.s32.totalorder %s17, 0
    %p101 = por %p99, %p100
    %p102 = scmp.ne.s32.totalorder %s90, %s91
    %p103 = scmp.eq.s32.totalorder %s18, 1
    %p104 = por %p102, %p103
    %p106 = scmp.ne.s32.totalorder %s91, %s105
    %p107 = scmp.eq.s32.totalorder %s18, 0
    %p108 = por %p106, %p107
    %s110 = sadd.s32 %s109, 1
    %p113 = scmp.eq.s32.totalorder %s12, 1
    %p114 = scmp.ne.s32.totalorder %s109, %s111
    %p115 = scmp.eq.s32.totalorder %s12, 0
    %p116 = por %p114, %p115
    %p117 = scmp.ne.s32.totalorder %s109, %s111
    %p118 = scmp.eq.s32.totalorder %s17, 1
    %p119 = por %p117, %p118
    %p120 = scmp.ne.s32.totalorder %s111, %s112
    %p121 = scmp.eq.s32.totalorder %s17, 0
    %p122 = por %p120, %p121
    %p123 = scmp.ne.s32.totalorder %s111, %s112
    %p124 = scmp.eq.s32.totalorder %s18, 1
    %p125 = por %p123, %p124
    %p127 = scmp.ne.s32.totalorder %s112, %s126
    %p128 = scmp.eq.s32.totalorder %s18, 0
    %p129 = por %p127, %p128
    %s131 = sadd.s32 %s130, 1
    %p134 = scmp.eq.s32.totalorder %s12, 1
    %p135 = scmp.ne.s32.totalorder %s130, %s132
    %p136 = scmp.eq.s32.totalorder %s12, 0
    %p137 = por %p135, %p136
    %p138 = scmp.ne.s32.totalorder %s130, %s132
    %p139 = scmp.eq.s32.totalorder %s17, 1
    %p140 = por %p138, %p139
    %p141 = scmp.ne.s32.totalorder %s132, %s133
    %p142 = scmp.eq.s32.totalorder %s17, 0
    %p143 = por %p141, %p142
    %p144 = scmp.ne.s32.totalorder %s132, %s133
    %p145 = scmp.eq.s32.totalorder %s18, 1
    %p146 = por %p144, %p145
    %p148 = scmp.ne.s32.totalorder %s133, %s147
    %p149 = scmp.eq.s32.totalorder %s18, 0
    %p150 = por %p148, %p149
    %s151 = ssub.s32 %s12, %s19
    %p152 = scmp.eq.s32.totalorder %s151, 0
    %s154 = sadd.s32 %s153, 1
    %s155 = scalar_select %p152, %s153, %s154
    %p158 = pneg %p152
    %p159 = scmp.eq.s32.totalorder %s12, 1
    %p160 = por %p158, %p159
    %p161 = scmp.ne.s32.totalorder %s153, %s156
    %p162 = scmp.eq.s32.totalorder %s12, 0
    %p163 = por %p161, %p162
    %p164 = scmp.ne.s32.totalorder %s153, %s156
    %p165 = scmp.eq.s32.totalorder %s17, 1
    %p166 = por %p164, %p165
    %p167 = scmp.ne.s32.totalorder %s156, %s157
    %p168 = scmp.eq.s32.totalorder %s17, 0
    %p169 = por %p167, %p168
    %p170 = scmp.ne.s32.totalorder %s156, %s157
    %p171 = scmp.eq.s32.totalorder %s18, 1
    %p172 = por %p170, %p171
    %p174 = scmp.ne.s32.totalorder %s157, %s173
    %p175 = scmp.eq.s32.totalorder %s18, 0
    %p176 = por %p174, %p175
    %p177 = scmp.le.s32.totalorder 1, %s12
    %p178 = scmp.lt.s32.totalorder %s12, 3
    %p179 = pnand %p177, %p178
    %p180 = pneg %p179
    // Predicated region
    $region9: #{model_forward.1} parent=5 // pred_check
      _
    $region10: #{model_forward.1} parent=5 // pred_check_branch
      %182 = sbr.rel (%p179) target = $region12
    $region11: #{model_forward.1} parent=5 // pred_region
      %s183 = ssub.s32 %s12, 1
      // Predicated region
      $region13: #{model_forward.1} parent=11 // pred_check
        %p184 = pneg %p59
      $region14: #{model_forward.1} parent=11 // pred_check_branch
        %186 = sbr.rel (%p184) target = $region16
      $region15: #{model_forward.1} parent=11 // pred_region
        _
      $region16: #{model_forward.1} parent=11 // pred_fallthru
        _
      // Predicated region
      $region17: #{model_forward.1} parent=11 // pred_check
        %p187 = pneg %p80
      $region18: #{model_forward.1} parent=11 // pred_check_branch
        %189 = sbr.rel (%p187) target = $region20
      $region19: #{model_forward.1} parent=11 // pred_region
        _
      $region20: #{model_forward.1} parent=11 // pred_fallthru
        _
      // Predicated region
      $region21: #{model_forward.1} parent=11 // pred_check
        %p190 = pneg %p101
      $region22: #{model_forward.1} parent=11 // pred_check_branch
        %192 = sbr.rel (%p190) target = $region24
      $region23: #{model_forward.1} parent=11 // pred_region
        _
      $region24: #{model_forward.1} parent=11 // pred_fallthru
        _
      // Predicated region
      $region25: #{model_forward.1} parent=11 // pred_check
        %p193 = pneg %p122
      $region26: #{model_forward.1} parent=11 // pred_check_branch
        %195 = sbr.rel (%p193) target = $region28
      $region27: #{model_forward.1} parent=11 // pred_region
        _
      $region28: #{model_forward.1} parent=11 // pred_fallthru
        _
      // Predicated region
      $region29: #{model_forward.1} parent=11 // pred_check
        %p196 = pneg %p143
      $region30: #{model_forward.1} parent=11 // pred_check_branch
        %198 = sbr.rel (%p196) target = $region32
      $region31: #{model_forward.1} parent=11 // pred_region
        _
      $region32: #{model_forward.1} parent=11 // pred_fallthru
        _
    $region12: #{model_forward.1} parent=5 // pred_fallthru
      _
    %p199 = scmp.lt.s32.totalorder %s12, 2
    // Predicated region
    $region33: #{model_forward.1} parent=5 // pred_check
      %p200 = pneg %p199
    $region34: #{model_forward.1} parent=5 // pred_check_branch
      %202 = sbr.rel (%p200) target = $region36
    $region35: #{model_forward.1} parent=5 // pred_region
      // Predicated region
      $region37: #{model_forward.1} parent=35 // pred_check
        %p203 = pneg %p32
      $region38: #{model_forward.1} parent=35 // pred_check_branch
        %205 = sbr.rel (%p203) target = $region40
      $region39: #{model_forward.1} parent=35 // pred_region
        %s206 = smul.u32 3, %s12
        %p207 = scmp.lt.s32.totalorder %s206, 5
        %s208 = scalar_select %p207, %s206, 5
        %s209 = smul.addr %s208, 8
        %s210 = scalar_lea.vmem %s0, %s209
        %s211 = smul.u32 3, %s12
      $region40: #{model_forward.1} parent=35 // pred_fallthru
        _
    $region36: #{model_forward.1} parent=5 // pred_fallthru
      _
    %p212 = scmp.le.s32.totalorder 1, %s12
    %p213 = scmp.lt.s32.totalorder %s12, 3
    %p214 = pnand %p212, %p213
    %p215 = pneg %p214
    // Predicated region
    $region41: #{model_forward.1} parent=5 // pred_check
      _
    $region42: #{model_forward.1} parent=5 // pred_check_branch
      %217 = sbr.rel (%p214) target = $region44
    $region43: #{model_forward.1} parent=5 // pred_region
      %s218 = ssub.s32 %s12, 1
      %s219 = smul.u32 3, %s17
      %p220 = scmp.lt.s32.totalorder %s219, 5
      %s221 = scalar_select %p220, %s219, 5
      %s222 = smul.addr %s221, 8
      %s223 = scalar_lea.vmem %s0, %s222
      %p224 = pneg %p38
      %p225 = pneg %p35
      %p226 = pneg %p59
      %p227 = pneg %p56
      %p228 = pneg %p80
      %p229 = pneg %p77
      %p230 = pneg %p101
      %p231 = pneg %p98
      %p232 = pneg %p122
      %p233 = pneg %p119
      %p234 = pneg %p143
      %p235 = pneg %p140
      %p236 = pneg %p169
      %p237 = pneg %p166
      %s238 = smul.u32 3, %s17
      %p239 = scmp.lt.s32.totalorder %s238, 5
      %s240 = scalar_select %p239, %s238, 5
      %s241 = smul.addr %s240, 8
      %s242 = scalar_lea.vmem %s6, %s241
      %s243 = smul.u32 3, %s17
      %p244 = scmp.lt.s32.totalorder %s243, 5
      %s245 = scalar_select %p244, %s243, 5
      %s246 = smul.addr %s245, 8
      %s247 = scalar_lea.vmem %s0, %s246
      %s248 = smul.u32 3, %s17
      %s249 = smul.u32 3, %s17
      %p250 = scmp.lt.s32.totalorder %s249, 5
      %s251 = scalar_select %p250, %s249, 5
      %s252 = smul.addr %s251, 8
      %s253 = scalar_lea.vmem %s6, %s252
      %s254 = smul.u32 3, %s17
      %v255 = vld [vmem:[%s1] sm:$0xff]
      %v256 = vld [vmem:[%s1 + $0x8] sm:$0xff]
      %v257 = vld [vmem:[%s1 + $0x10] sm:$0xff]
      %v258 = vld [vmem:[%s1 + $0x18] sm:$0xff]
      %v259 = vld [vmem:[%s247] sm:$0xff]
      %v260 = vld [vmem:[%s247 + $0x8] sm:$0xff]
      %v261 = vld [vmem:[%s247 + $0x10] sm:$0xff]
      %265 = vrot.lane.b32.xlu0 %v259, 19
      %v266 = vpop.permute.xlu0 %265
      %267 = vrot.lane.b32.xlu0 %v260, 19
      %v268 = vpop.permute.xlu0 %267
      %269 = vrot.lane.b32.xlu0 %v261, 19
      %v270 = vpop.permute.xlu0 %269
      %vm271 = vcmask 154624
      %v272 = vsel %vm271, %v266, %v268
      %v273 = vsel %vm271, %v268, %v270
      %v278 = vsel %vm271, 0.0, %v266
      %v279 = vsel %vm271, %v270, 0.0
      %282 = vrot.lane.b32.xlu0 %v278, 127
      %v283 = vpop.permute.xlu0 %282
      %284 = vrot.lane.b32.xlu0 %v272, 127
      %v285 = vpop.permute.xlu0 %284
      %286 = vrot.lane.b32.xlu0 %v273, 127
      %v287 = vpop.permute.xlu0 %286
      %288 = vrot.lane.b32.xlu0 %v279, 127
      %v289 = vpop.permute.xlu0 %288
      %vm290 = vcmask 1039360
      %v291 = vsel %vm290, %v283, %v285
      %v292 = vsel %vm290, %v285, %v287
      %v293 = vsel %vm290, %v287, %v289
      %297 = vrot.lane.b32.xlu0 %v278, 126
      %v298 = vpop.permute.xlu0 %297
      %299 = vrot.lane.b32.xlu0 %v272, 126
      %v300 = vpop.permute.xlu0 %299
      %301 = vrot.lane.b32.xlu0 %v273, 126
      %v302 = vpop.permute.xlu0 %301
      %303 = vrot.lane.b32.xlu0 %v279, 126
      %v304 = vpop.permute.xlu0 %303
      %vm305 = vcmask 1031168
      %v306 = vsel %vm305, %v298, %v300
      %v307 = vsel %vm305, %v300, %v302
      %v308 = vsel %vm305, %v302, %v304
      %312 = vrot.lane.b32.xlu0 %v278, 110
      %v313 = vpop.permute.xlu0 %312
      %314 = vrot.lane.b32.xlu0 %v272, 110
      %v315 = vpop.permute.xlu0 %314
      %316 = vrot.lane.b32.xlu0 %v273, 110
      %v317 = vpop.permute.xlu0 %316
      %318 = vrot.lane.b32.xlu0 %v279, 110
      %v319 = vpop.permute.xlu0 %318
      %vm320 = vcmask 900096
      %v321 = vsel %vm320, %v313, %v315
      %v322 = vsel %vm320, %v315, %v317
      %v323 = vsel %vm320, %v317, %v319
      %327 = vrot.lane.b32.xlu0 %v278, 109
      %v328 = vpop.permute.xlu0 %327
      %329 = vrot.lane.b32.xlu0 %v272, 109
      %v330 = vpop.permute.xlu0 %329
      %331 = vrot.lane.b32.xlu0 %v273, 109
      %v332 = vpop.permute.xlu0 %331
      %333 = vrot.lane.b32.xlu0 %v279, 109
      %v334 = vpop.permute.xlu0 %333
      %vm335 = vcmask 891904
      %v336 = vsel %vm335, %v328, %v330
      %v337 = vsel %vm335, %v330, %v332
      %v338 = vsel %vm335, %v332, %v334
      %342 = vrot.lane.b32.xlu0 %v278, 108
      %v343 = vpop.permute.xlu0 %342
      %344 = vrot.lane.b32.xlu0 %v272, 108
      %v345 = vpop.permute.xlu0 %344
      %346 = vrot.lane.b32.xlu0 %v273, 108
      %v347 = vpop.permute.xlu0 %346
      %348 = vrot.lane.b32.xlu0 %v279, 108
      %v349 = vpop.permute.xlu0 %348
      %vm350 = vcmask 883712
      %v351 = vsel %vm350, %v343, %v345
      %v352 = vsel %vm350, %v345, %v347
      %v353 = vsel %vm350, %v347, %v349
      %357 = vrot.lane.b32.xlu0 %v278, 92
      %v358 = vpop.permute.xlu0 %357
      %359 = vrot.lane.b32.xlu0 %v272, 92
      %v360 = vpop.permute.xlu0 %359
      %361 = vrot.lane.b32.xlu0 %v273, 92
      %v362 = vpop.permute.xlu0 %361
      %363 = vrot.lane.b32.xlu0 %v279, 92
      %v364 = vpop.permute.xlu0 %363
      %vm365 = vcmask 752640
      %v366 = vsel %vm365, %v358, %v360
      %v367 = vsel %vm365, %v360, %v362
      %v368 = vsel %vm365, %v362, %v364
      %372 = vrot.lane.b32.xlu0 %v278, 91
      %v373 = vpop.permute.xlu0 %372
      %374 = vrot.lane.b32.xlu0 %v272, 91
      %v375 = vpop.permute.xlu0 %374
      %376 = vrot.lane.b32.xlu0 %v273, 91
      %v377 = vpop.permute.xlu0 %376
      %378 = vrot.lane.b32.xlu0 %v279, 91
      %v379 = vpop.permute.xlu0 %378
      %vm380 = vcmask 744448
      %v381 = vsel %vm380, %v373, %v375
      %v382 = vsel %vm380, %v375, %v377
      %v383 = vsel %vm380, %v377, %v379
      %387 = vrot.lane.b32.xlu0 %v278, 90
      %v388 = vpop.permute.xlu0 %387
      %389 = vrot.lane.b32.xlu0 %v272, 90
      %v390 = vpop.permute.xlu0 %389
      %391 = vrot.lane.b32.xlu0 %v273, 90
      %v392 = vpop.permute.xlu0 %391
      %393 = vrot.lane.b32.xlu0 %v279, 90
      %v394 = vpop.permute.xlu0 %393
      %vm395 = vcmask 736256
      %v396 = vsel %vm395, %v388, %v390
      %v397 = vsel %vm395, %v390, %v392
      %v398 = vsel %vm395, %v392, %v394
      %v402 = vld [vmem:[%s2] sm:$0xff]
      %v403 = vld [vmem:[%s2 + $0x8] sm:$0xff]
      %v404 = vld [vmem:[%s2 + $0x10] sm:$0xff]
      %v405 = vld [vmem:[%s2 + $0x18] sm:$0xff]
      %407 = vset.pattern.permute.xlu0 0
      %408 = vperm.xlu0 %407, %v402
      %v409 = vpop.permute.xlu0 %408
      %412 = vset.pattern.permute.xlu0 0
      %413 = vperm.xlu0 %412, %v403
      %v414 = vpop.permute.xlu0 %413
      %417 = vset.pattern.permute.xlu0 0
      %418 = vperm.xlu0 %417, %v404
      %v419 = vpop.permute.xlu0 %418
      %422 = vset.pattern.permute.xlu0 0
      %423 = vperm.xlu0 %422, %v405
      %v424 = vpop.permute.xlu0 %423
      %vm426 = vcmask 588800
      %v428 = vsel %vm426, %v255, 0
      %v431 = vsel %vm426, %v256, 0
      %v434 = vsel %vm426, %v257, 0
      %v437 = vsel %vm426, %v258, 0
      %439 = vmatprep.subr.mxu0 %v272
      %440 = vmatpush1.msra.mxu0 %v278
      %441 = vmatprep.subr.mxu0 %v292
      %442 = vmatpush1.msra.mxu0 %v291
      %443 = vmatprep.subr.mxu0 %v307
      %444 = vmatpush1.msra.mxu0 %v306
      %445 = vmatprep.subr.mxu0 %v322
      %446 = vmatpush1.msra.mxu0 %v321
      %447 = vmatprep.subr.mxu0 %v337
      %448 = vmatpush1.msra.mxu0 %v336
      %449 = vmatprep.subr.mxu0 %v352
      %450 = vmatpush1.msra.mxu0 %v351
      %451 = vmatprep.subr.mxu0 %v367
      %452 = vmatpush1.msra.mxu0 %v366
      %453 = vmatprep.subr.mxu0 %v382
      %454 = vmatpush1.msra.mxu0 %v381
      %455 = vmatprep.subr.mxu0 %v397
      %456 = vmatpush1.msra.mxu0 %v396
      %457 = vmatprep.subr.mxu0 0.0
      %458 = vmatpush1.msra.mxu0 0.0
      %459 = vmatprep.subr.mxu0 0.0
      %460 = vmatpush1.msra.mxu0 0.0
      %461 = vmatprep.subr.mxu0 0.0
      %462 = vmatpush1.msra.mxu0 0.0
      %463 = vmatprep.subr.mxu0 0.0
      %464 = vmatpush1.msra.mxu0 0.0
      %465 = vmatprep.subr.mxu0 0.0
      %466 = vmatpush1.msra.mxu0 0.0
      %467 = vmatprep.subr.mxu0 0.0
      %468 = vmatpush1.msra.mxu0 0.0
      %469 = vmatprep.subr.mxu0 0.0
      %470 = vmatpush1.msra.mxu0 0.0
      %471 = vmatprep.subr.mxu0 0.0
      %472 = vmatpush1.msra.mxu0 0.0
      %473 = vmatprep.subr.mxu0 0.0
      %474 = vmatpush1.msra.mxu0 0.0
      %475 = vmatprep.subr.mxu0 0.0
      %476 = vmatpush1.msra.mxu0 0.0
      %477 = vmatprep.subr.mxu0 0.0
      %478 = vmatpush1.msra.mxu0 0.0
      %479 = vmatprep.subr.mxu0 0.0
      %480 = vmatpush1.msra.mxu0 0.0
      %481 = vmatprep.subr.mxu0 0.0
      %482 = vmatpush1.msra.mxu0 0.0
      %483 = vmatprep.subr.mxu0 0.0
      %484 = vmatpush1.msra.mxu0 0.0
      %485 = vmatprep.subr.mxu0 0.0
      %486 = vmatpush1.msra.mxu0 0.0
      %487 = vmatprep.subr.mxu0 0.0
      %488 = vmatpush1.msra.mxu0 0.0
      %489 = vmatprep.subr.mxu0 0.0
      %490 = vmatpush1.msra.mxu0 0.0
      %491 = vmatprep.subr.mxu0 0.0
      %492 = vmatpush1.msra.mxu0 0.0
      %493 = vmatprep.subr.mxu0 0.0
      %494 = vmatpush1.msra.mxu0 0.0
      %495 = vmatprep.subr.mxu0 0.0
      %496 = vmatpush1.msra.mxu0 0.0
      %497 = vmatprep.subr.mxu0 0.0
      %498 = vmatpush1.msra.mxu0 0.0
      %499 = vmatprep.subr.mxu0 0.0
      %500 = vmatpush1.msra.mxu0 0.0
      %501 = vmatprep.subr.mxu0 0.0
      %502 = vmatpush1.msra.mxu0 0.0
      %503 = vmatprep.mubr.f32.mxu0 0.0
      %504 = vmatmul.mubr.f32.gmra.mrb[0].mxu0 %v428
      %v505 = vpop.f32.mrb[0].mxu0
      %v506 = vadd.f32 %v409, %v505
      %v507 = vpop.f32.mrb[0].mxu0
      %v508 = vadd.f32 %v409, %v507
      %509 = vmatprep.mubr.f32.mxu0 0.0
      %510 = vmatmul.mubr.f32.gmra.mrb[0].mxu0 %v431
      %v511 = vpop.f32.mrb[0].mxu0
      %v512 = vadd.f32 %v414, %v511
      %v513 = vpop.f32.mrb[0].mxu0
      %v514 = vadd.f32 %v414, %v513
      %515 = vmatprep.mubr.f32.mxu0 0.0
      %516 = vmatmul.mubr.f32.gmra.mrb[0].mxu0 %v434
      %v517 = vpop.f32.mrb[0].mxu0
      %v518 = vadd.f32 %v419, %v517
      %v519 = vpop.f32.mrb[0].mxu0
      %v520 = vadd.f32 %v419, %v519
      %521 = vmatprep.mubr.f32.mxu0 0.0
      %522 = vmatmul.mubr.f32.gmra.mrb[0].mxu0 %v437
      %v523 = vpop.f32.mrb[0].mxu0
      %v524 = vadd.f32 %v424, %v523
      %v525 = vpop.f32.mrb[0].mxu0
      %v526 = vadd.f32 %v424, %v525
      %527 = vdwg.mxu0
      %528 = vmatprep.subr.mxu0 0.0
      %529 = vmatpush1.msra.mxu0 %v273
      %530 = vmatprep.subr.mxu0 0.0
      %531 = vmatpush1.msra.mxu0 %v293
      %532 = vmatprep.subr.mxu0 0.0
      %533 = vmatpush1.msra.mxu0 %v308
      %534 = vmatprep.subr.mxu0 0.0
      %535 = vmatpush1.msra.mxu0 %v323
      %536 = vmatprep.subr.mxu0 0.0
      %537 = vmatpush1.msra.mxu0 %v338
      %538 = vmatprep.subr.mxu0 0.0
      %539 = vmatpush1.msra.mxu0 %v353
      %540 = vmatprep.subr.mxu0 0.0
      %541 = vmatpush1.msra.mxu0 %v368
      %542 = vmatprep.subr.mxu0 0.0
      %543 = vmatpush1.msra.mxu0 %v383
      %544 = vmatprep.subr.mxu0 0.0
      %545 = vmatpush1.msra.mxu0 %v398
      %546 = vmatprep.subr.mxu0 0.0
      %547 = vmatpush1.msra.mxu0 0.0
      %548 = vmatprep.subr.mxu0 0.0
      %549 = vmatpush1.msra.mxu0 0.0
      %550 = vmatprep.subr.mxu0 0.0
      %551 = vmatpush1.msra.mxu0 0.0
      %552 = vmatprep.subr.mxu0 0.0
      %553 = vmatpush1.msra.mxu0 0.0
      %554 = vmatprep.subr.mxu0 0.0
      %555 = vmatpush1.msra.mxu0 0.0
      %556 = vmatprep.subr.mxu0 0.0
      %557 = vmatpush1.msra.mxu0 0.0
      %558 = vmatprep.subr.mxu0 0.0
      %559 = vmatpush1.msra.mxu0 0.0
      %560 = vmatprep.subr.mxu0 0.0
      %561 = vmatpush1.msra.mxu0 0.0
      %562 = vmatprep.subr.mxu0 0.0
      %563 = vmatpush1.msra.mxu0 0.0
      %564 = vmatprep.subr.mxu0 0.0
      %565 = vmatpush1.msra.mxu0 0.0
      %566 = vmatprep.subr.mxu0 0.0
      %567 = vmatpush1.msra.mxu0 0.0
      %568 = vmatprep.subr.mxu0 0.0
      %569 = vmatpush1.msra.mxu0 0.0
      %570 = vmatprep.subr.mxu0 0.0
      %571 = vmatpush1.msra.mxu0 0.0
      %572 = vmatprep.subr.mxu0 0.0
      %573 = vmatpush1.msra.mxu0 0.0
      %574 = vmatprep.subr.mxu0 0.0
      %575 = vmatpush1.msra.mxu0 0.0
      %576 = vmatprep.subr.mxu0 0.0
      %577 = vmatpush1.msra.mxu0 0.0
      %578 = vmatprep.subr.mxu0 0.0
      %579 = vmatpush1.msra.mxu0 0.0
      %580 = vmatprep.subr.mxu0 0.0
      %581 = vmatpush1.msra.mxu0 0.0
      %582 = vmatprep.subr.mxu0 0.0
      %583 = vmatpush1.msra.mxu0 0.0
      %584 = vmatprep.subr.mxu0 0.0
      %585 = vmatpush1.msra.mxu0 0.0
      %586 = vmatprep.subr.mxu0 0.0
      %587 = vmatpush1.msra.mxu0 0.0
      %588 = vmatprep.subr.mxu0 0.0
      %589 = vmatpush1.msra.mxu0 0.0
      %590 = vmatprep.subr.mxu0 0.0
      %591 = vmatpush1.msra.mxu0 0.0
      %592 = vmatprep.mubr.f32.mxu0 0.0
      %593 = vmatmul.mubr.f32.gmra.mrb[0].mxu0 %v428
      %v594 = vpop.f32.mrb[0].mxu0
      %v595 = vadd.f32 %v409, %v594
      %v596 = vpop.f32.mrb[0].mxu0
      %597 = vmatprep.mubr.f32.mxu0 0.0
      %598 = vmatmul.mubr.f32.gmra.mrb[0].mxu0 %v431
      %v599 = vpop.f32.mrb[0].mxu0
      %v600 = vadd.f32 %v414, %v599
      %v601 = vpop.f32.mrb[0].mxu0
      %602 = vmatprep.mubr.f32.mxu0 0.0
      %603 = vmatmul.mubr.f32.gmra.mrb[0].mxu0 %v434
      %v604 = vpop.f32.mrb[0].mxu0
      %v605 = vadd.f32 %v419, %v604
      %v606 = vpop.f32.mrb[0].mxu0
      %607 = vmatprep.mubr.f32.mxu0 0.0
      %608 = vmatmul.mubr.f32.gmra.mrb[0].mxu0 %v437
      %v609 = vpop.f32.mrb[0].mxu0
      %v610 = vadd.f32 %v424, %v609
      %v611 = vpop.f32.mrb[0].mxu0
      %612 = vdwg.mxu0
      %v613 = vld [vmem:[%s5] sm:$0x7]
      %v615 = vlaneseq
      %v616 = vshrl.u32 %v615, 7
      %v617 = vsub.s32 0, %v616
      %v618 = vrot.slane %v613, %v617
      %v619 = vlaneseq
      %v620 = vshrl.u32 %v619, 7
      %v621 = vsub.s32 1, %v620
      %v622 = vrot.slane %v613, %v621
      %v623 = vlaneseq
      %v624 = vshrl.u32 %v623, 7
      %v625 = vsub.s32 2, %v624
      %v626 = vrot.slane %v613, %v625
      %v630 = vmul.f32 %v506, %v618
      %v631 = vmul.f32 %v508, %v622
      %v632 = vmul.f32 %v595, %v626
      %v633 = vmul.f32 %v512, %v618
      %v634 = vmul.f32 %v514, %v622
      %v635 = vmul.f32 %v600, %v626
      %v636 = vmul.f32 %v518, %v618
      %v637 = vmul.f32 %v520, %v622
      %v638 = vmul.f32 %v605, %v626
      %v639 = vmul.f32 %v524, %v618
      %v640 = vmul.f32 %v526, %v622
      %v641 = vmul.f32 %v610, %v626
      %v642 = vld [vmem:[%s3] sm:$0xff]
      %v643 = vld [vmem:[%s3 + $0x8] sm:$0xff]
      %v644 = vld [vmem:[%s3 + $0x10] sm:$0xff]
      %657 = vrot.lane.b32.xlu0 %v630, 19
      %v658 = vpop.permute.xlu0 %657
      %659 = vrot.lane.b32.xlu0 %v631, 19
      %v660 = vpop.permute.xlu0 %659
      %661 = vrot.lane.b32.xlu0 %v632, 19
      %v662 = vpop.permute.xlu0 %661
      %663 = vrot.lane.b32.xlu0 %v633, 19
      %v664 = vpop.permute.xlu0 %663
      %665 = vrot.lane.b32.xlu0 %v634, 19
      %v666 = vpop.permute.xlu0 %665
      %667 = vrot.lane.b32.xlu0 %v635, 19
      %v668 = vpop.permute.xlu0 %667
      %669 = vrot.lane.b32.xlu0 %v636, 19
      %v670 = vpop.permute.xlu0 %669
      %671 = vrot.lane.b32.xlu0 %v637, 19
      %v672 = vpop.permute.xlu0 %671
      %673 = vrot.lane.b32.xlu0 %v638, 19
      %v674 = vpop.permute.xlu0 %673
      %675 = vrot.lane.b32.xlu0 %v639, 19
      %v676 = vpop.permute.xlu0 %675
      %677 = vrot.lane.b32.xlu0 %v640, 19
      %v678 = vpop.permute.xlu0 %677
      %679 = vrot.lane.b32.xlu0 %v641, 19
      %v680 = vpop.permute.xlu0 %679
      %v681 = vsel %vm271, %v658, %v660
      %v682 = vsel %vm271, %v660, %v662
      %v683 = vsel %vm271, %v664, %v666
      %v684 = vsel %vm271, %v666, %v668
      %v685 = vsel %vm271, %v670, %v672
      %v686 = vsel %vm271, %v672, %v674
      %v687 = vsel %vm271, %v676, %v678
      %v688 = vsel %vm271, %v678, %v680
      %v705 = vsel %vm271, 0.0, %v658
      %v706 = vsel %vm271, 0.0, %v664
      %v707 = vsel %vm271, 0.0, %v670
      %v708 = vsel %vm271, 0.0, %v676
      %v709 = vsel %vm271, %v662, 0.0
      %v710 = vsel %vm271, %v668, 0.0
      %v711 = vsel %vm271, %v674, 0.0
      %v712 = vsel %vm271, %v680, 0.0
      %721 = vrot.lane.b32.xlu0 %v705, 127
      %v722 = vpop.permute.xlu0 %721
      %723 = vrot.lane.b32.xlu0 %v681, 127
      %v724 = vpop.permute.xlu0 %723
      %725 = vrot.lane.b32.xlu0 %v682, 127
      %v726 = vpop.permute.xlu0 %725
      %727 = vrot.lane.b32.xlu0 %v709, 127
      %v728 = vpop.permute.xlu0 %727
      %729 = vrot.lane.b32.xlu0 %v706, 127
      %v730 = vpop.permute.xlu0 %729
      %731 = vrot.lane.b32.xlu0 %v683, 127
      %v732 = vpop.permute.xlu0 %731
      %733 = vrot.lane.b32.xlu0 %v684, 127
      %v734 = vpop.permute.xlu0 %733
      %735 = vrot.lane.b32.xlu0 %v710, 127
      %v736 = vpop.permute.xlu0 %735
      %737 = vrot.lane.b32.xlu0 %v707, 127
      %v738 = vpop.permute.xlu0 %737
      %739 = vrot.lane.b32.xlu0 %v685, 127
      %v740 = vpop.permute.xlu0 %739
      %741 = vrot.lane.b32.xlu0 %v686, 127
      %v742 = vpop.permute.xlu0 %741
      %743 = vrot.lane.b32.xlu0 %v711, 127
      %v744 = vpop.permute.xlu0 %743
      %745 = vrot.lane.b32.xlu0 %v708, 127
      %v746 = vpop.permute.xlu0 %745
      %747 = vrot.lane.b32.xlu0 %v687, 127
      %v748 = vpop.permute.xlu0 %747
      %749 = vrot.lane.b32.xlu0 %v688, 127
      %v750 = vpop.permute.xlu0 %749
      %751 = vrot.lane.b32.xlu0 %v712, 127
      %v752 = vpop.permute.xlu0 %751
      %v753 = vsel %vm290, %v722, %v724
      %v754 = vsel %vm290, %v724, %v726
      %v755 = vsel %vm290, %v726, %v728
      %v756 = vsel %vm290, %v730, %v732
      %v757 = vsel %vm290, %v732, %v734
      %v758 = vsel %vm290, %v734, %v736
      %v759 = vsel %vm290, %v738, %v740
      %v760 = vsel %vm290, %v740, %v742
      %v761 = vsel %vm290, %v742, %v744
      %v762 = vsel %vm290, %v746, %v748
      %v763 = vsel %vm290, %v748, %v750
      %v764 = vsel %vm290, %v750, %v752
      %777 = vrot.lane.b32.xlu0 %v705, 126
      %v778 = vpop.permute.xlu0 %777
      %779 = vrot.lane.b32.xlu0 %v681, 126
      %v780 = vpop.permute.xlu0 %779
      %781 = vrot.lane.b32.xlu0 %v682, 126
      %v782 = vpop.permute.xlu0 %781
      %783 = vrot.lane.b32.xlu0 %v709, 126
      %v784 = vpop.permute.xlu0 %783
      %785 = vrot.lane.b32.xlu0 %v706, 126
      %v786 = vpop.permute.xlu0 %785
      %787 = vrot.lane.b32.xlu0 %v683, 126
      %v788 = vpop.permute.xlu0 %787
      %789 = vrot.lane.b32.xlu0 %v684, 126
      %v790 = vpop.permute.xlu0 %789
      %791 = vrot.lane.b32.xlu0 %v710, 126
      %v792 = vpop.permute.xlu0 %791
      %793 = vrot.lane.b32.xlu0 %v707, 126
      %v794 = vpop.permute.xlu0 %793
      %795 = vrot.lane.b32.xlu0 %v685, 126
      %v796 = vpop.permute.xlu0 %795
      %797 = vrot.lane.b32.xlu0 %v686, 126
      %v798 = vpop.permute.xlu0 %797
      %799 = vrot.lane.b32.xlu0 %v711, 126
      %v800 = vpop.permute.xlu0 %799
      %801 = vrot.lane.b32.xlu0 %v708, 126
      %v802 = vpop.permute.xlu0 %801
      %803 = vrot.lane.b32.xlu0 %v687, 126
      %v804 = vpop.permute.xlu0 %803
      %805 = vrot.lane.b32.xlu0 %v688, 126
      %v806 = vpop.permute.xlu0 %805
      %807 = vrot.lane.b32.xlu0 %v712, 126
      %v808 = vpop.permute.xlu0 %807
      %v809 = vsel %vm305, %v778, %v780
      %v810 = vsel %vm305, %v780, %v782
      %v811 = vsel %vm305, %v782, %v784
      %v812 = vsel %vm305, %v786, %v788
      %v813 = vsel %vm305, %v788, %v790
      %v814 = vsel %vm305, %v790, %v792
      %v815 = vsel %vm305, %v794, %v796
      %v816 = vsel %vm305, %v796, %v798
      %v817 = vsel %vm305, %v798, %v800
      %v818 = vsel %vm305, %v802, %v804
      %v819 = vsel %vm305, %v804, %v806
      %v820 = vsel %vm305, %v806, %v808
      %833 = vrot.lane.b32.xlu0 %v705, 110
      %v834 = vpop.permute.xlu0 %833
      %835 = vrot.lane.b32.xlu0 %v681, 110
      %v836 = vpop.permute.xlu0 %835
      %837 = vrot.lane.b32.xlu0 %v682, 110
      %v838 = vpop.permute.xlu0 %837
      %839 = vrot.lane.b32.xlu0 %v709, 110
      %v840 = vpop.permute.xlu0 %839
      %841 = vrot.lane.b32.xlu0 %v706, 110
      %v842 = vpop.permute.xlu0 %841
      %843 = vrot.lane.b32.xlu0 %v683, 110
      %v844 = vpop.permute.xlu0 %843
      %845 = vrot.lane.b32.xlu0 %v684, 110
      %v846 = vpop.permute.xlu0 %845
      %847 = vrot.lane.b32.xlu0 %v710, 110
      %v848 = vpop.permute.xlu0 %847
      %849 = vrot.lane.b32.xlu0 %v707, 110
      %v850 = vpop.permute.xlu0 %849
      %851 = vrot.lane.b32.xlu0 %v685, 110
      %v852 = vpop.permute.xlu0 %851
      %853 = vrot.lane.b32.xlu0 %v686, 110
      %v854 = vpop.permute.xlu0 %853
      %855 = vrot.lane.b32.xlu0 %v711, 110
      %v856 = vpop.permute.xlu0 %855
      %857 = vrot.lane.b32.xlu0 %v708, 110
      %v858 = vpop.permute.xlu0 %857
      %859 = vrot.lane.b32.xlu0 %v687, 110
      %v860 = vpop.permute.xlu0 %859
      %861 = vrot.lane.b32.xlu0 %v688, 110
      %v862 = vpop.permute.xlu0 %861
      %863 = vrot.lane.b32.xlu0 %v712, 110
      %v864 = vpop.permute.xlu0 %863
      %v865 = vsel %vm320, %v834, %v836
      %v866 = vsel %vm320, %v836, %v838
      %v867 = vsel %vm320, %v838, %v840
      %v868 = vsel %vm320, %v842, %v844
      %v869 = vsel %vm320, %v844, %v846
      %v870 = vsel %vm320, %v846, %v848
      %v871 = vsel %vm320, %v850, %v852
      %v872 = vsel %vm320, %v852, %v854
      %v873 = vsel %vm320, %v854, %v856
      %v874 = vsel %vm320, %v858, %v860
      %v875 = vsel %vm320, %v860, %v862
      %v876 = vsel %vm320, %v862, %v864
      %889 = vrot.lane.b32.xlu0 %v705, 109
      %v890 = vpop.permute.xlu0 %889
      %891 = vrot.lane.b32.xlu0 %v681, 109
      %v892 = vpop.permute.xlu0 %891
      %893 = vrot.lane.b32.xlu0 %v682, 109
      %v894 = vpop.permute.xlu0 %893
      %895 = vrot.lane.b32.xlu0 %v709, 109
      %v896 = vpop.permute.xlu0 %895
      %897 = vrot.lane.b32.xlu0 %v706, 109
      %v898 = vpop.permute.xlu0 %897
      %899 = vrot.lane.b32.xlu0 %v683, 109
      %v900 = vpop.permute.xlu0 %899
      %901 = vrot.lane.b32.xlu0 %v684, 109
      %v902 = vpop.permute.xlu0 %901
      %903 = vrot.lane.b32.xlu0 %v710, 109
      %v904 = vpop.permute.xlu0 %903
      %905 = vrot.lane.b32.xlu0 %v707, 109
      %v906 = vpop.permute.xlu0 %905
      %907 = vrot.lane.b32.xlu0 %v685, 109
      %v908 = vpop.permute.xlu0 %907
      %909 = vrot.lane.b32.xlu0 %v686, 109
      %v910 = vpop.permute.xlu0 %909
      %911 = vrot.lane.b32.xlu0 %v711, 109
      %v912 = vpop.permute.xlu0 %911
      %913 = vrot.lane.b32.xlu0 %v708, 109
      %v914 = vpop.permute.xlu0 %913
      %915 = vrot.lane.b32.xlu0 %v687, 109
      %v916 = vpop.permute.xlu0 %915
      %917 = vrot.lane.b32.xlu0 %v688, 109
      %v918 = vpop.permute.xlu0 %917
      %919 = vrot.lane.b32.xlu0 %v712, 109
      %v920 = vpop.permute.xlu0 %919
      %v921 = vsel %vm335, %v890, %v892
      %v922 = vsel %vm335, %v892, %v894
      %v923 = vsel %vm335, %v894, %v896
      %v924 = vsel %vm335, %v898, %v900
      %v925 = vsel %vm335, %v900, %v902
      %v926 = vsel %vm335, %v902, %v904
      %v927 = vsel %vm335, %v906, %v908
      %v928 = vsel %vm335, %v908, %v910
      %v929 = vsel %vm335, %v910, %v912
      %v930 = vsel %vm335, %v914, %v916
      %v931 = vsel %vm335, %v916, %v918
      %v932 = vsel %vm335, %v918, %v920
      %945 = vrot.lane.b32.xlu0 %v705, 108
      %v946 = vpop.permute.xlu0 %945
      %947 = vrot.lane.b32.xlu0 %v681, 108
      %v948 = vpop.permute.xlu0 %947
      %949 = vrot.lane.b32.xlu0 %v682, 108
      %v950 = vpop.permute.xlu0 %949
      %951 = vrot.lane.b32.xlu0 %v709, 108
      %v952 = vpop.permute.xlu0 %951
      %953 = vrot.lane.b32.xlu0 %v706, 108
      %v954 = vpop.permute.xlu0 %953
      %955 = vrot.lane.b32.xlu0 %v683, 108
      %v956 = vpop.permute.xlu0 %955
      %957 = vrot.lane.b32.xlu0 %v684, 108
      %v958 = vpop.permute.xlu0 %957
      %959 = vrot.lane.b32.xlu0 %v710, 108
      %v960 = vpop.permute.xlu0 %959
      %961 = vrot.lane.b32.xlu0 %v707, 108
      %v962 = vpop.permute.xlu0 %961
      %963 = vrot.lane.b32.xlu0 %v685, 108
      %v964 = vpop.permute.xlu0 %963
      %965 = vrot.lane.b32.xlu0 %v686, 108
      %v966 = vpop.permute.xlu0 %965
      %967 = vrot.lane.b32.xlu0 %v711, 108
      %v968 = vpop.permute.xlu0 %967
      %969 = vrot.lane.b32.xlu0 %v708, 108
      %v970 = vpop.permute.xlu0 %969
      %971 = vrot.lane.b32.xlu0 %v687, 108
      %v972 = vpop.permute.xlu0 %971
      %973 = vrot.lane.b32.xlu0 %v688, 108
      %v974 = vpop.permute.xlu0 %973
      %975 = vrot.lane.b32.xlu0 %v712, 108
      %v976 = vpop.permute.xlu0 %975
      %v977 = vsel %vm350, %v946, %v948
      %v978 = vsel %vm350, %v948, %v950
      %v979 = vsel %vm350, %v950, %v952
      %v980 = vsel %vm350, %v954, %v956
      %v981 = vsel %vm350, %v956, %v958
      %v982 = vsel %vm350, %v958, %v960
      %v983 = vsel %vm350, %v962, %v964
      %v984 = vsel %vm350, %v964, %v966
      %v985 = vsel %vm350, %v966, %v968
      %v986 = vsel %vm350, %v970, %v972
      %v987 = vsel %vm350, %v972, %v974
      %v988 = vsel %vm350, %v974, %v976
      %1001 = vrot.lane.b32.xlu0 %v705, 92
      %v1002 = vpop.permute.xlu0 %1001
      %1003 = vrot.lane.b32.xlu0 %v681, 92
      %v1004 = vpop.permute.xlu0 %1003
      %1005 = vrot.lane.b32.xlu0 %v682, 92
      %v1006 = vpop.permute.xlu0 %1005
      %1007 = vrot.lane.b32.xlu0 %v709, 92
      %v1008 = vpop.permute.xlu0 %1007
      %1009 = vrot.lane.b32.xlu0 %v706, 92
      %v1010 = vpop.permute.xlu0 %1009
      %1011 = vrot.lane.b32.xlu0 %v683, 92
      %v1012 = vpop.permute.xlu0 %1011
      %1013 = vrot.lane.b32.xlu0 %v684, 92
      %v1014 = vpop.permute.xlu0 %1013
      %1015 = vrot.lane.b32.xlu0 %v710, 92
      %v1016 = vpop.permute.xlu0 %1015
      %1017 = vrot.lane.b32.xlu0 %v707, 92
      %v1018 = vpop.permute.xlu0 %1017
      %1019 = vrot.lane.b32.xlu0 %v685, 92
      %v1020 = vpop.permute.xlu0 %1019
      %1021 = vrot.lane.b32.xlu0 %v686, 92
      %v1022 = vpop.permute.xlu0 %1021
      %1023 = vrot.lane.b32.xlu0 %v711, 92
      %v1024 = vpop.permute.xlu0 %1023
      %1025 = vrot.lane.b32.xlu0 %v708, 92
      %v1026 = vpop.permute.xlu0 %1025
      %1027 = vrot.lane.b32.xlu0 %v687, 92
      %v1028 = vpop.permute.xlu0 %1027
      %1029 = vrot.lane.b32.xlu0 %v688, 92
      %v1030 = vpop.permute.xlu0 %1029
      %1031 = vrot.lane.b32.xlu0 %v712, 92
      %v1032 = vpop.permute.xlu0 %1031
      %v1033 = vsel %vm365, %v1002, %v1004
      %v1034 = vsel %vm365, %v1004, %v1006
      %v1035 = vsel %vm365, %v1006, %v1008
      %v1036 = vsel %vm365, %v1010, %v1012
      %v1037 = vsel %vm365, %v1012, %v1014
      %v1038 = vsel %vm365, %v1014, %v1016
      %v1039 = vsel %vm365, %v1018, %v1020
      %v1040 = vsel %vm365, %v1020, %v1022
      %v1041 = vsel %vm365, %v1022, %v1024
      %v1042 = vsel %vm365, %v1026, %v1028
      %v1043 = vsel %vm365, %v1028, %v1030
      %v1044 = vsel %vm365, %v1030, %v1032
      %1057 = vrot.lane.b32.xlu0 %v705, 91
      %v1058 = vpop.permute.xlu0 %1057
      %1059 = vrot.lane.b32.xlu0 %v681, 91
      %v1060 = vpop.permute.xlu0 %1059
      %1061 = vrot.lane.b32.xlu0 %v682, 91
      %v1062 = vpop.permute.xlu0 %1061
      %1063 = vrot.lane.b32.xlu0 %v709, 91
      %v1064 = vpop.permute.xlu0 %1063
      %1065 = vrot.lane.b32.xlu0 %v706, 91
      %v1066 = vpop.permute.xlu0 %1065
      %1067 = vrot.lane.b32.xlu0 %v683, 91
      %v1068 = vpop.permute.xlu0 %1067
      %1069 = vrot.lane.b32.xlu0 %v684, 91
      %v1070 = vpop.permute.xlu0 %1069
      %1071 = vrot.lane.b32.xlu0 %v710, 91
      %v1072 = vpop.permute.xlu0 %1071
      %1073 = vrot.lane.b32.xlu0 %v707, 91
      %v1074 = vpop.permute.xlu0 %1073
      %1075 = vrot.lane.b32.xlu0 %v685, 91
      %v1076 = vpop.permute.xlu0 %1075
      %1077 = vrot.lane.b32.xlu0 %v686, 91
      %v1078 = vpop.permute.xlu0 %1077
      %1079 = vrot.lane.b32.xlu0 %v711, 91
      %v1080 = vpop.permute.xlu0 %1079
      %1081 = vrot.lane.b32.xlu0 %v708, 91
      %v1082 = vpop.permute.xlu0 %1081
      %1083 = vrot.lane.b32.xlu0 %v687, 91
      %v1084 = vpop.permute.xlu0 %1083
      %1085 = vrot.lane.b32.xlu0 %v688, 91
      %v1086 = vpop.permute.xlu0 %1085
      %1087 = vrot.lane.b32.xlu0 %v712, 91
      %v1088 = vpop.permute.xlu0 %1087
      %v1089 = vsel %vm380, %v1058, %v1060
      %v1090 = vsel %vm380, %v1060, %v1062
      %v1091 = vsel %vm380, %v1062, %v1064
      %v1092 = vsel %vm380, %v1066, %v1068
      %v1093 = vsel %vm380, %v1068, %v1070
      %v1094 = vsel %vm380, %v1070, %v1072
      %v1095 = vsel %vm380, %v1074, %v1076
      %v1096 = vsel %vm380, %v1076, %v1078
      %v1097 = vsel %vm380, %v1078, %v1080
      %v1098 = vsel %vm380, %v1082, %v1084
      %v1099 = vsel %vm380, %v1084, %v1086
      %v1100 = vsel %vm380, %v1086, %v1088
      %1113 = vrot.lane.b32.xlu0 %v705, 90
      %v1114 = vpop.permute.xlu0 %1113
      %1115 = vrot.lane.b32.xlu0 %v681, 90
      %v1116 = vpop.permute.xlu0 %1115
      %1117 = vrot.lane.b32.xlu0 %v682, 90
      %v1118 = vpop.permute.xlu0 %1117
      %1119 = vrot.lane.b32.xlu0 %v709, 90
      %v1120 = vpop.permute.xlu0 %1119
      %1121 = vrot.lane.b32.xlu0 %v706, 90
      %v1122 = vpop.permute.xlu0 %1121
      %1123 = vrot.lane.b32.xlu0 %v683, 90
      %v1124 = vpop.permute.xlu0 %1123
      %1125 = vrot.lane.b32.xlu0 %v684, 90
      %v1126 = vpop.permute.xlu0 %1125
      %1127 = vrot.lane.b32.xlu0 %v710, 90
      %v1128 = vpop.permute.xlu0 %1127
      %1129 = vrot.lane.b32.xlu0 %v707, 90
      %v1130 = vpop.permute.xlu0 %1129
      %1131 = vrot.lane.b32.xlu0 %v685, 90
      %v1132 = vpop.permute.xlu0 %1131
      %1133 = vrot.lane.b32.xlu0 %v686, 90
      %v1134 = vpop.permute.xlu0 %1133
      %1135 = vrot.lane.b32.xlu0 %v711, 90
      %v1136 = vpop.permute.xlu0 %1135
      %1137 = vrot.lane.b32.xlu0 %v708, 90
      %v1138 = vpop.permute.xlu0 %1137
      %1139 = vrot.lane.b32.xlu0 %v687, 90
      %v1140 = vpop.permute.xlu0 %1139
      %1141 = vrot.lane.b32.xlu0 %v688, 90
      %v1142 = vpop.permute.xlu0 %1141
      %1143 = vrot.lane.b32.xlu0 %v712, 90
      %v1144 = vpop.permute.xlu0 %1143
      %v1145 = vsel %vm395, %v1114, %v1116
      %v1146 = vsel %vm395, %v1116, %v1118
      %v1147 = vsel %vm395, %v1118, %v1120
      %v1148 = vsel %vm395, %v1122, %v1124
      %v1149 = vsel %vm395, %v1124, %v1126
      %v1150 = vsel %vm395, %v1126, %v1128
      %v1151 = vsel %vm395, %v1130, %v1132
      %v1152 = vsel %vm395, %v1132, %v1134
      %v1153 = vsel %vm395, %v1134, %v1136
      %v1154 = vsel %vm395, %v1138, %v1140
      %v1155 = vsel %vm395, %v1140, %v1142
      %v1156 = vsel %vm395, %v1142, %v1144
      %v1169 = vld [vmem:[%s4] sm:$0xff]
      %1171 = vset.pattern.permute.xlu0 0
      %1172 = vperm.xlu0 %1171, %v1169
      %v1173 = vpop.permute.xlu0 %1172
      %vm1175 = vcmask 261120
      %v1177 = vsel %vm1175, %v644, 0
      %1179 = vmatprep.subr.mxu0 %v681
      %1180 = vmatpush1.msra.mxu0 %v705
      %1181 = vmatprep.subr.mxu0 %v683
      %1182 = vmatpush1.msra.mxu0 %v706
      %1183 = vmatprep.subr.mxu0 %v685
      %1184 = vmatpush1.msra.mxu0 %v707
      %1185 = vmatprep.subr.mxu0 %v687
      %1186 = vmatpush1.msra.mxu0 %v708
      %1187 = vmatprep.subr.mxu0 %v754
      %1188 = vmatpush1.msra.mxu0 %v753
      %1189 = vmatprep.subr.mxu0 %v757
      %1190 = vmatpush1.msra.mxu0 %v756
      %1191 = vmatprep.subr.mxu0 %v760
      %1192 = vmatpush1.msra.mxu0 %v759
      %1193 = vmatprep.subr.mxu0 %v763
      %1194 = vmatpush1.msra.mxu0 %v762
      %1195 = vmatprep.subr.mxu0 %v810
      %1196 = vmatpush1.msra.mxu0 %v809
      %1197 = vmatprep.subr.mxu0 %v813
      %1198 = vmatpush1.msra.mxu0 %v812
      %1199 = vmatprep.subr.mxu0 %v816
      %1200 = vmatpush1.msra.mxu0 %v815
      %1201 = vmatprep.subr.mxu0 %v819
      %1202 = vmatpush1.msra.mxu0 %v818
      %1203 = vmatprep.subr.mxu0 %v866
      %1204 = vmatpush1.msra.mxu0 %v865
      %1205 = vmatprep.subr.mxu0 %v869
      %1206 = vmatpush1.msra.mxu0 %v868
      %1207 = vmatprep.subr.mxu0 %v872
      %1208 = vmatpush1.msra.mxu0 %v871
      %1209 = vmatprep.subr.mxu0 %v875
      %1210 = vmatpush1.msra.mxu0 %v874
      %1211 = vmatprep.subr.mxu0 %v922
      %1212 = vmatpush1.msra.mxu0 %v921
      %1213 = vmatprep.subr.mxu0 %v925
      %1214 = vmatpush1.msra.mxu0 %v924
      %1215 = vmatprep.subr.mxu0 %v928
      %1216 = vmatpush1.msra.mxu0 %v927
      %1217 = vmatprep.subr.mxu0 %v931
      %1218 = vmatpush1.msra.mxu0 %v930
      %1219 = vmatprep.subr.mxu0 %v978
      %1220 = vmatpush1.msra.mxu0 %v977
      %1221 = vmatprep.subr.mxu0 %v981
      %1222 = vmatpush1.msra.mxu0 %v980
      %1223 = vmatprep.subr.mxu0 %v984
      %1224 = vmatpush1.msra.mxu0 %v983
      %1225 = vmatprep.subr.mxu0 %v987
      %1226 = vmatpush1.msra.mxu0 %v986
      %1227 = vmatprep.subr.mxu0 %v1034
      %1228 = vmatpush1.msra.mxu0 %v1033
      %1229 = vmatprep.subr.mxu0 %v1037
      %1230 = vmatpush1.msra.mxu0 %v1036
      %1231 = vmatprep.subr.mxu0 %v1040
      %1232 = vmatpush1.msra.mxu0 %v1039
      %1233 = vmatprep.subr.mxu0 %v1043
      %1234 = vmatpush1.msra.mxu0 %v1042
      %1235 = vmatprep.subr.mxu0 %v1090
      %1236 = vmatpush1.msra.mxu0 %v1089
      %1237 = vmatprep.subr.mxu0 %v1093
      %1238 = vmatpush1.msra.mxu0 %v1092
      %1239 = vmatprep.subr.mxu0 %v1096
      %1240 = vmatpush1.msra.mxu0 %v1095
      %1241 = vmatprep.subr.mxu0 %v1099
      %1242 = vmatpush1.msra.mxu0 %v1098
      %1243 = vmatprep.mubr.f32.mxu0 %v643
      %1244 = vmatmul.mubr.f32.gmra.mrb[0].mxu0 %v642
      %v1245 = vpop.f32.mrb[0].mxu0
      %v1246 = vadd.f32 %v1173, %v1245
      %v1247 = vpop.f32.mrb[0].mxu0
      %v1248 = vadd.f32 %v1173, %v1247
      %1249 = vdwg.mxu0
      %1250 = vmatprep.subr.mxu0 %v1146
      %1251 = vmatpush1.msra.mxu0 %v1145
      %1252 = vmatprep.subr.mxu0 %v1149
      %1253 = vmatpush1.msra.mxu0 %v1148
      %1254 = vmatprep.subr.mxu0 %v1152
      %1255 = vmatpush1.msra.mxu0 %v1151
      %1256 = vmatprep.subr.mxu0 %v1155
      %1257 = vmatpush1.msra.mxu0 %v1154
      %1258 = vmatprep.subr.mxu0 0.0
      %1259 = vmatpush1.msra.mxu0 0.0
      %1260 = vmatprep.subr.mxu0 0.0
      %1261 = vmatpush1.msra.mxu0 0.0
      %1262 = vmatprep.subr.mxu0 0.0
      %1263 = vmatpush1.msra.mxu0 0.0
      %1264 = vmatprep.subr.mxu0 0.0
      %1265 = vmatpush1.msra.mxu0 0.0
      %1266 = vmatprep.subr.mxu0 0.0
      %1267 = vmatpush1.msra.mxu0 0.0
      %1268 = vmatprep.subr.mxu0 0.0
      %1269 = vmatpush1.msra.mxu0 0.0
      %1270 = vmatprep.subr.mxu0 0.0
      %1271 = vmatpush1.msra.mxu0 0.0
      %1272 = vmatprep.subr.mxu0 0.0
      %1273 = vmatpush1.msra.mxu0 0.0
      %1274 = vmatprep.subr.mxu0 0.0
      %1275 = vmatpush1.msra.mxu0 0.0
      %1276 = vmatprep.subr.mxu0 0.0
      %1277 = vmatpush1.msra.mxu0 0.0
      %1278 = vmatprep.subr.mxu0 0.0
      %1279 = vmatpush1.msra.mxu0 0.0
      %1280 = vmatprep.subr.mxu0 0.0
      %1281 = vmatpush1.msra.mxu0 0.0
      %1282 = vmatprep.subr.mxu0 0.0
      %1283 = vmatpush1.msra.mxu0 0.0
      %1284 = vmatprep.subr.mxu0 0.0
      %1285 = vmatpush1.msra.mxu0 0.0
      %1286 = vmatprep.subr.mxu0 0.0
      %1287 = vmatpush1.msra.mxu0 0.0
      %1288 = vmatprep.subr.mxu0 0.0
      %1289 = vmatpush1.msra.mxu0 0.0
      %1290 = vmatprep.subr.mxu0 0.0
      %1291 = vmatpush1.msra.mxu0 0.0
      %1292 = vmatprep.subr.mxu0 0.0
      %1293 = vmatpush1.msra.mxu0 0.0
      %1294 = vmatprep.subr.mxu0 0.0
      %1295 = vmatpush1.msra.mxu0 0.0
      %1296 = vmatprep.subr.mxu0 0.0
      %1297 = vmatpush1.msra.mxu0 0.0
      %1298 = vmatprep.subr.mxu0 0.0
      %1299 = vmatpush1.msra.mxu0 0.0
      %1300 = vmatprep.subr.mxu0 0.0
      %1301 = vmatpush1.msra.mxu0 0.0
      %1302 = vmatprep.subr.mxu0 0.0
      %1303 = vmatpush1.msra.mxu0 0.0
      %1304 = vmatprep.subr.mxu0 0.0
      %1305 = vmatpush1.msra.mxu0 0.0
      %1306 = vmatprep.subr.mxu0 0.0
      %1307 = vmatpush1.msra.mxu0 0.0
      %1308 = vmatprep.subr.mxu0 0.0
      %1309 = vmatpush1.msra.mxu0 0.0
      %1310 = vmatprep.subr.mxu0 0.0
      %1311 = vmatpush1.msra.mxu0 0.0
      %1312 = vmatprep.subr.mxu0 0.0
      %1313 = vmatpush1.msra.mxu0 0.0
      %1314 = vmatprep.mubr.f32.mxu0 0.0
      %1315 = vmatmul.mubr.f32.gmra.mrb[0].mxu0 %v1177
      %v1316 = vpop.f32.mrb[0].mxu0
      %v1317 = vadd.f32 %v1246, %v1316
      %v1318 = vpop.f32.mrb[0].mxu0
      %v1319 = vadd.f32 %v1248, %v1318
      %1320 = vdwg.mxu0
      %1321 = vmatprep.subr.mxu0 0.0
      %1322 = vmatpush1.msra.mxu0 %v682
      %1323 = vmatprep.subr.mxu0 0.0
      %1324 = vmatpush1.msra.mxu0 %v684
      %1325 = vmatprep.subr.mxu0 0.0
      %1326 = vmatpush1.msra.mxu0 %v686
      %1327 = vmatprep.subr.mxu0 0.0
      %1328 = vmatpush1.msra.mxu0 %v688
      %1329 = vmatprep.subr.mxu0 0.0
      %1330 = vmatpush1.msra.mxu0 %v755
      %1331 = vmatprep.subr.mxu0 0.0
      %1332 = vmatpush1.msra.mxu0 %v758
      %1333 = vmatprep.subr.mxu0 0.0
      %1334 = vmatpush1.msra.mxu0 %v761
      %1335 = vmatprep.subr.mxu0 0.0
      %1336 = vmatpush1.msra.mxu0 %v764
      %1337 = vmatprep.subr.mxu0 0.0
      %1338 = vmatpush1.msra.mxu0 %v811
      %1339 = vmatprep.subr.mxu0 0.0
      %1340 = vmatpush1.msra.mxu0 %v814
      %1341 = vmatprep.subr.mxu0 0.0
      %1342 = vmatpush1.msra.mxu0 %v817
      %1343 = vmatprep.subr.mxu0 0.0
      %1344 = vmatpush1.msra.mxu0 %v820
      %1345 = vmatprep.subr.mxu0 0.0
      %1346 = vmatpush1.msra.mxu0 %v867
      %1347 = vmatprep.subr.mxu0 0.0
      %1348 = vmatpush1.msra.mxu0 %v870
      %1349 = vmatprep.subr.mxu0 0.0
      %1350 = vmatpush1.msra.mxu0 %v873
      %1351 = vmatprep.subr.mxu0 0.0
      %1352 = vmatpush1.msra.mxu0 %v876
      %1353 = vmatprep.subr.mxu0 0.0
      %1354 = vmatpush1.msra.mxu0 %v923
      %1355 = vmatprep.subr.mxu0 0.0
      %1356 = vmatpush1.msra.mxu0 %v926
      %1357 = vmatprep.subr.mxu0 0.0
      %1358 = vmatpush1.msra.mxu0 %v929
      %1359 = vmatprep.subr.mxu0 0.0
      %1360 = vmatpush1.msra.mxu0 %v932
      %1361 = vmatprep.subr.mxu0 0.0
      %1362 = vmatpush1.msra.mxu0 %v979
      %1363 = vmatprep.subr.mxu0 0.0
      %1364 = vmatpush1.msra.mxu0 %v982
      %1365 = vmatprep.subr.mxu0 0.0
      %1366 = vmatpush1.msra.mxu0 %v985
      %1367 = vmatprep.subr.mxu0 0.0
      %1368 = vmatpush1.msra.mxu0 %v988
      %1369 = vmatprep.subr.mxu0 0.0
      %1370 = vmatpush1.msra.mxu0 %v1035
      %1371 = vmatprep.subr.mxu0 0.0
      %1372 = vmatpush1.msra.mxu0 %v1038
      %1373 = vmatprep.subr.mxu0 0.0
      %1374 = vmatpush1.msra.mxu0 %v1041
      %1375 = vmatprep.subr.mxu0 0.0
      %1376 = vmatpush1.msra.mxu0 %v1044
      %1377 = vmatprep.subr.mxu0 0.0
      %1378 = vmatpush1.msra.mxu0 %v1091
      %1379 = vmatprep.subr.mxu0 0.0
      %1380 = vmatpush1.msra.mxu0 %v1094
      %1381 = vmatprep.subr.mxu0 0.0
      %1382 = vmatpush1.msra.mxu0 %v1097
      %1383 = vmatprep.subr.mxu0 0.0
      %1384 = vmatpush1.msra.mxu0 %v1100
      %1385 = vmatprep.mubr.f32.mxu0 %v643
      %1386 = vmatmul.mubr.f32.gmra.mrb[0].mxu0 %v642
      %v1387 = vpop.f32.mrb[0].mxu0
      %v1388 = vadd.f32 %v1173, %v1387
      %v1389 = vpop.f32.mrb[0].mxu0
      %1390 = vdwg.mxu0
      %1391 = vmatprep.subr.mxu0 0.0
      %1392 = vmatpush1.msra.mxu0 %v1147
      %1393 = vmatprep.subr.mxu0 0.0
      %1394 = vmatpush1.msra.mxu0 %v1150
      %1395 = vmatprep.subr.mxu0 0.0
      %1396 = vmatpush1.msra.mxu0 %v1153
      %1397 = vmatprep.subr.mxu0 0.0
      %1398 = vmatpush1.msra.mxu0 %v1156
      %1399 = vmatprep.subr.mxu0 0.0
      %1400 = vmatpush1.msra.mxu0 0.0
      %1401 = vmatprep.subr.mxu0 0.0
      %1402 = vmatpush1.msra.mxu0 0.0
      %1403 = vmatprep.subr.mxu0 0.0
      %1404 = vmatpush1.msra.mxu0 0.0
      %1405 = vmatprep.subr.mxu0 0.0
      %1406 = vmatpush1.msra.mxu0 0.0
      %1407 = vmatprep.subr.mxu0 0.0
      %1408 = vmatpush1.msra.mxu0 0.0
      %1409 = vmatprep.subr.mxu0 0.0
      %1410 = vmatpush1.msra.mxu0 0.0
      %1411 = vmatprep.subr.mxu0 0.0
      %1412 = vmatpush1.msra.mxu0 0.0
      %1413 = vmatprep.subr.mxu0 0.0
      %1414 = vmatpush1.msra.mxu0 0.0
      %1415 = vmatprep.subr.mxu0 0.0
      %1416 = vmatpush1.msra.mxu0 0.0
      %1417 = vmatprep.subr.mxu0 0.0
      %1418 = vmatpush1.msra.mxu0 0.0
      %1419 = vmatprep.subr.mxu0 0.0
      %1420 = vmatpush1.msra.mxu0 0.0
      %1421 = vmatprep.subr.mxu0 0.0
      %1422 = vmatpush1.msra.mxu0 0.0
      %1423 = vmatprep.subr.mxu0 0.0
      %1424 = vmatpush1.msra.mxu0 0.0
      %1425 = vmatprep.subr.mxu0 0.0
      %1426 = vmatpush1.msra.mxu0 0.0
      %1427 = vmatprep.subr.mxu0 0.0
      %1428 = vmatpush1.msra.mxu0 0.0
      %1429 = vmatprep.subr.mxu0 0.0
      %1430 = vmatpush1.msra.mxu0 0.0
      %1431 = vmatprep.subr.mxu0 0.0
      %1432 = vmatpush1.msra.mxu0 0.0
      %1433 = vmatprep.subr.mxu0 0.0
      %1434 = vmatpush1.msra.mxu0 0.0
      %1435 = vmatprep.subr.mxu0 0.0
      %1436 = vmatpush1.msra.mxu0 0.0
      %1437 = vmatprep.subr.mxu0 0.0
      %1438 = vmatpush1.msra.mxu0 0.0
      %1439 = vmatprep.subr.mxu0 0.0
      %1440 = vmatpush1.msra.mxu0 0.0
      %1441 = vmatprep.subr.mxu0 0.0
      %1442 = vmatpush1.msra.mxu0 0.0
      %1443 = vmatprep.subr.mxu0 0.0
      %1444 = vmatpush1.msra.mxu0 0.0
      %1445 = vmatprep.subr.mxu0 0.0
      %1446 = vmatpush1.msra.mxu0 0.0
      %1447 = vmatprep.subr.mxu0 0.0
      %1448 = vmatpush1.msra.mxu0 0.0
      %1449 = vmatprep.subr.mxu0 0.0
      %1450 = vmatpush1.msra.mxu0 0.0
      %1451 = vmatprep.subr.mxu0 0.0
      %1452 = vmatpush1.msra.mxu0 0.0
      %1453 = vmatprep.subr.mxu0 0.0
      %1454 = vmatpush1.msra.mxu0 0.0
      %1455 = vmatprep.mubr.f32.mxu0 0.0
      %1456 = vmatmul.mubr.f32.gmra.mrb[0].mxu0 %v1177
      %v1457 = vpop.f32.mrb[0].mxu0
      %v1458 = vadd.f32 %v1388, %v1457
      %v1459 = vpop.f32.mrb[0].mxu0
      %1460 = vdwg.mxu0
      %1461 = vst [vmem:[%s253] sm:$0xff] %v1317
      %1462 = vst [vmem:[%s253 + $0x8] sm:$0xff] %v1319
      %1463 = vst [vmem:[%s253 + $0x10] sm:$0xff] %v1458
      %s1464 = smul.u32 3, %s17
      %p1465 = scmp.lt.s32.totalorder %s1464, 5
      %s1466 = scalar_select %p1465, %s1464, 5
      %s1467 = smul.addr %s1466, 8
      %s1468 = scalar_lea.vmem %s6, %s1467
      // Predicated region
      $region45: #{model_forward.1} parent=43 // pred_check
        %p1469 = pneg %p166
      $region46: #{model_forward.1} parent=43 // pred_check_branch
        %1471 = sbr.rel (%p1469) target = $region48
      $region47: #{model_forward.1} parent=43 // pred_region
        %s1472 = smul.u32 3, %s17
      $region48: #{model_forward.1} parent=43 // pred_fallthru
        _
    $region44: #{model_forward.1} parent=5 // pred_fallthru
      _
    %p1473 = scmp.le.s32.totalorder 2, %s12
    // Predicated region
    $region49: #{model_forward.1} parent=5 // pred_check
      %p1474 = pneg %p1473
    $region50: #{model_forward.1} parent=5 // pred_check_branch
      %1476 = sbr.rel (%p1474) target = $region52
    $region51: #{model_forward.1} parent=5 // pred_region
      %s1477 = ssub.s32 %s12, 2
      // Predicated region
      $region53: #{model_forward.1} parent=51 // pred_check
        %p1478 = pneg %p172
      $region54: #{model_forward.1} parent=51 // pred_check_branch
        %1480 = sbr.rel (%p1478) target = $region56
      $region55: #{model_forward.1} parent=51 // pred_region
        %s1481 = smul.u32 3, %s18
        %p1482 = scmp.lt.s32.totalorder %s1481, 5
        %s1483 = scalar_select %p1482, %s1481, 5
        %s1484 = smul.addr %s1483, 8
        %s1485 = scalar_lea.vmem %s6, %s1484
      $region56: #{model_forward.1} parent=51 // pred_fallthru
        _
    $region52: #{model_forward.1} parent=5 // pred_fallthru
      _
  $region6: #{model_forward.1} parent=0 // loop_footer
    %s16 = sadd.s32 1, %s12
  $region7: #{model_forward.1} parent=0 // loop_footer_branch
    %11 = sbr.rel target = $region3
  $region8: #{model_forward.1} parent=0 // loop_exit
    _

</llo_original>
